<compile_context>
chip_gen: v7x
topology: tpu7x:2x2x1
jax: 0.10.0
libtpu: 0.0.40
codegen_flags: <defaults>
</compile_context>

<pallas_src>
import functools

import jax
import jax.numpy as jnp
from jax.experimental import pallas as pl
from jax.experimental.pallas import tpu as pltpu


def _round_up(v, m):
    return (v + m - 1) // m * m


def _mlp_kernel(x_ref, w1_ref, b1_ref, w2_ref, b2_ref, o_ref):
    """Fused hidden-Linear + ReLU + predict-Linear for one batch-row tile."""
    x = x_ref[...]                                                    # (TN, F) f32
    # hidden = relu(x @ W1 + b1): f32 matmul on the MXU, bias + ReLU on the VPU.
    h = jnp.dot(x, w1_ref[...], preferred_element_type=jnp.float32)   # (TN, H)
    h = jnp.maximum(h + b1_ref[...], 0.0)
    # predict = h @ W2 + b2.
    y = jnp.dot(h, w2_ref[...], preferred_element_type=jnp.float32)   # (TN, O)
    o_ref[...] = (y + b2_ref[...]).astype(o_ref.dtype)


@functools.partial(jax.jit, static_argnames=("tn",))
def net_forward(x, w1, b1, w2, b2, *, tn=1024):
    """x: (N, F) f32.  w1: (F, H), b1: (H,), w2: (H, O), b2: (O,).  Returns (N, O) f32."""
    n, f = x.shape
    h = w1.shape[1]
    o = w2.shape[1]

    # ---- batch tile selection -------------------------------------------------
    # Big tiles amortize the ~0.35 us per-grid-step overhead, but keep >= 2
    # blocks whenever possible so the "parallel" batch axis can be split
    # across both v7x TensorCores.
    if n <= 16:
        tn_eff = n                                  # single block == full array dim (legal)
    else:
        half = _round_up(-(-n // 2), 8)             # ceil(n/2) rounded to 8 sublanes
        tn_eff = max(8, min(tn, half))
    n_blocks = pl.cdiv(n, tn_eff)                   # ragged tail handled by Pallas masking

    # Biases as (1, dim) rows — pure metadata reshape, broadcast in-kernel.
    b1_2d = b1.reshape(1, h).astype(jnp.float32)
    b2_2d = b2.reshape(1, o).astype(jnp.float32)

    # ---- VMEM budget from actual block sizes ----------------------------------
    # Double-buffered streams (x tile in, out tile back) + single-copy resident
    # weights/biases + compiler headroom; capped at 48 MiB (< v7x 64 MiB/TC).
    bytes_stream = tn_eff * (f + o) * 4
    bytes_resident = (f * h + h * o + h + o) * 4
    vmem_bytes = 2 * 2 * bytes_stream + 2 * bytes_resident + (4 << 20)
    vmem_bytes = int(min(max(vmem_bytes, 16 << 20), 48 << 20))

    # Advisory cost: matches the real (unpadded) traffic the kernel generates.
    cost = pl.CostEstimate(
        flops=2 * n * (f * h + h * o),
        transcendentals=0,
        bytes_accessed=4 * (n * f + f * h + h * o + h + o + n * o),
    )

    return pl.pallas_call(
        _mlp_kernel,
        out_shape=jax.ShapeDtypeStruct((n, o), jnp.float32),
        grid=(n_blocks,),
        in_specs=[
            pl.BlockSpec((tn_eff, f), lambda i: (i, 0)),  # x: streamed per batch tile
            pl.BlockSpec((f, h), lambda i: (0, 0)),       # W1: VMEM-resident (constant index)
            pl.BlockSpec((1, h), lambda i: (0, 0)),       # b1: VMEM-resident
            pl.BlockSpec((h, o), lambda i: (0, 0)),       # W2: VMEM-resident
            pl.BlockSpec((1, o), lambda i: (0, 0)),       # b2: VMEM-resident
        ],
        out_specs=pl.BlockSpec((tn_eff, o), lambda i: (i, 0)),
        compiler_params=pltpu.CompilerParams(
            dimension_semantics=("parallel",),            # megacore / v7x 2-TC sharding
            vmem_limit_bytes=vmem_bytes,
        ),
        cost_estimate=cost,
    )(x, w1, b1_2d, w2, b2_2d)


def net_forward_ref(x, w1, b1, w2, b2):
    """Pure-JAX f32 reference matching torch semantics."""
    hp = jax.lax.Precision.HIGHEST
    h = jnp.maximum(jnp.dot(x, w1, precision=hp) + b1, 0.0)
    return jnp.dot(h, w2, precision=hp) + b2


def init_linear_params(key, fan_in, fan_out):
    """Deterministic init mimicking torch.nn.Linear (uniform +-1/sqrt(fan_in)).

    Stored as (in, out), i.e. the transpose of torch's (out, in) — one-time
    parameter preprocessing, outside the per-call forward.
    """
    kw, kb = jax.random.split(key)
    bound = 1.0 / jnp.sqrt(jnp.float32(fan_in))
    w = jax.random.uniform(kw, (fan_in, fan_out), jnp.float32, -bound, bound)
    b = jax.random.uniform(kb, (fan_out,), jnp.float32, -bound, bound)
    return w, b


if __name__ == "__main__":
    # Regression net Net(n_features, n_hidden, n_output) from the tutorial.
    # Nothing is padded, so the tutorial's exact (100, 1) input with
    # Net(1, 10, 1) works through the same code path; we use slightly wider
    # dims here so both matmuls exercise the MXU and the grid has 2 blocks.
    N, F, H, O = 128, 8, 32, 8

    root = jax.random.PRNGKey(0)
    kx, k1, k2 = jax.random.split(root, 3)

    x = jax.random.normal(kx, (N, F), dtype=jnp.float32)
    w1, b1 = init_linear_params(k1, F, H)   # self.hidden
    w2, b2 = init_linear_params(k2, H, O)   # self.predict

    out = jax.block_until_ready(net_forward(x, w1, b1, w2, b2))

    ref = net_forward_ref(x, w1, b1, w2, b2)
    assert out.shape == (N, O)
    assert jnp.allclose(out, ref, atol=1e-2, rtol=1e-2), "mismatch vs reference"

    print("KERNEL_OK")
</pallas_src>

<mosaic_0001>
module attributes {stable_mosaic.version = 11 : i64} {
  func.func @_mlp_kernel(%arg0: i32, %arg1: memref<64x8xf32, #tpu.memory_space<vmem>>, %arg2: memref<8x32xf32, #tpu.memory_space<vmem>>, %arg3: memref<1x32xf32, #tpu.memory_space<vmem>>, %arg4: memref<32x8xf32, #tpu.memory_space<vmem>>, %arg5: memref<1x8xf32, #tpu.memory_space<vmem>>, %arg6: memref<64x8xf32, #tpu.memory_space<vmem>>) attributes {dimension_semantics = [#tpu.dimension_semantics<parallel>], iteration_bounds = array<i64: 2>, scalar_prefetch = 0 : i64, scratch_operands = 0 : i64, tpu.core_type = #tpu.core_type<tc>, window_params = [{transform_indices = @transform_0, window_bounds = array<i64: 64, 8>}, {pipeline_mode = #tpu.pipeline_mode<synchronous>, transform_indices = @transform_1, window_bounds = array<i64: 8, 32>}, {pipeline_mode = #tpu.pipeline_mode<synchronous>, transform_indices = @transform_2, window_bounds = array<i64: 1, 32>}, {pipeline_mode = #tpu.pipeline_mode<synchronous>, transform_indices = @transform_3, window_bounds = array<i64: 32, 8>}, {pipeline_mode = #tpu.pipeline_mode<synchronous>, transform_indices = @transform_4, window_bounds = array<i64: 1, 8>}, {transform_indices = @transform_5, window_bounds = array<i64: 64, 8>}]} {
    %c0 = arith.constant 0 : index
    %c0_0 = arith.constant 0 : index
    %0 = vector.load %arg1[%c0, %c0_0] : memref<64x8xf32, #tpu.memory_space<vmem>>, vector<64x8xf32>
    %c0_1 = arith.constant 0 : index
    %c0_2 = arith.constant 0 : index
    %1 = vector.load %arg2[%c0_1, %c0_2] : memref<8x32xf32, #tpu.memory_space<vmem>>, vector<8x32xf32>
    %cst = arith.constant dense<0.000000e+00> : vector<64x32xf32>
    %2 = tpu.matmul %0, %1, %cst {dimension_numbers = #tpu.dot_dimension_numbers<[1], [0], [0], [1], [0, 0, 1, 1], [], []>} : vector<64x8xf32>, vector<8x32xf32>, vector<64x32xf32> -> vector<64x32xf32>
    %c0_3 = arith.constant 0 : index
    %c0_4 = arith.constant 0 : index
    %3 = vector.load %arg3[%c0_3, %c0_4] : memref<1x32xf32, #tpu.memory_space<vmem>>, vector<1x32xf32>
    %4 = vector.broadcast %3 : vector<1x32xf32> to vector<64x32xf32>
    %5 = arith.addf %2, %4 : vector<64x32xf32>
    %cst_5 = arith.constant 0.000000e+00 : f32
    %6 = vector.broadcast %cst_5 : f32 to vector<64x32xf32>
    %7 = arith.maximumf %5, %6 : vector<64x32xf32>
    %c0_6 = arith.constant 0 : index
    %c0_7 = arith.constant 0 : index
    %8 = vector.load %arg4[%c0_6, %c0_7] : memref<32x8xf32, #tpu.memory_space<vmem>>, vector<32x8xf32>
    %cst_8 = arith.constant dense<0.000000e+00> : vector<64x8xf32>
    %9 = tpu.matmul %7, %8, %cst_8 {dimension_numbers = #tpu.dot_dimension_numbers<[1], [0], [0], [1], [0, 0, 1, 1], [], []>} : vector<64x32xf32>, vector<32x8xf32>, vector<64x8xf32> -> vector<64x8xf32>
    %c0_9 = arith.constant 0 : index
    %c0_10 = arith.constant 0 : index
    %10 = vector.load %arg5[%c0_9, %c0_10] : memref<1x8xf32, #tpu.memory_space<vmem>>, vector<1x8xf32>
    %11 = vector.broadcast %10 : vector<1x8xf32> to vector<64x8xf32>
    %12 = arith.addf %9, %11 : vector<64x8xf32>
    %c0_11 = arith.constant 0 : index
    %c0_12 = arith.constant 0 : index
    %13 = vector.load %arg6[%c0_11, %c0_12] : memref<64x8xf32, #tpu.memory_space<vmem>>, vector<64x8xf32>
    tpu.vector_store %arg6[%c0_11, %c0_12], %12 {strides = array<i32>} : memref<64x8xf32, #tpu.memory_space<vmem>>, vector<64x8xf32>,
    return
  }
  func.func @transform_0(%arg0: i32) -> (i32, i32) {
    %c0_i32 = arith.constant 0 : i32
    %c0_i32_0 = arith.constant 0 : i32
    return %arg0, %c0_i32 : i32, i32
  }
  func.func @transform_1(%arg0: i32) -> (i32, i32) {
    %c0_i32 = arith.constant 0 : i32
    %c0_i32_0 = arith.constant 0 : i32
    %c0_i32_1 = arith.constant 0 : i32
    return %c0_i32, %c0_i32_0 : i32, i32
  }
  func.func @transform_2(%arg0: i32) -> (i32, i32) {
    %c0_i32 = arith.constant 0 : i32
    %c0_i32_0 = arith.constant 0 : i32
    %c0_i32_1 = arith.constant 0 : i32
    return %c0_i32, %c0_i32_0 : i32, i32
  }
  func.func @transform_3(%arg0: i32) -> (i32, i32) {
    %c0_i32 = arith.constant 0 : i32
    %c0_i32_0 = arith.constant 0 : i32
    %c0_i32_1 = arith.constant 0 : i32
    return %c0_i32, %c0_i32_0 : i32, i32
  }
  func.func @transform_4(%arg0: i32) -> (i32, i32) {
    %c0_i32 = arith.constant 0 : i32
    %c0_i32_0 = arith.constant 0 : i32
    %c0_i32_1 = arith.constant 0 : i32
    return %c0_i32, %c0_i32_0 : i32, i32
  }
  func.func @transform_5(%arg0: i32) -> (i32, i32) {
    %c0_i32 = arith.constant 0 : i32
    %c0_i32_0 = arith.constant 0 : i32
    return %arg0, %c0_i32 : i32, i32
  }
}

</mosaic_0001>

<llo_original>
// kernel: net_forward.1
$region0: #{net_forward.1}
  #allocation0 [shape = 'u32[]', space=smem, size = 0x4, offset = 0x4, fixed_abs, tag = 'smem constant byte address 0x4 - core index']
  #allocation1 [shape = 'u32[144,128]{1,0:T(1,128)}', space=vmem, size = 0x12000, scoped, tag = 'internal scratch']
  %s0 = inlined_call_operand.vmem [shape: f32[128,8], index: 0, kind: input, shape index: {}]
  %s1 = inlined_call_operand.vmem [shape: f32[8,32], index: 1, kind: input, shape index: {}]
  %s2 = inlined_call_operand.vmem [shape: f32[1,32], index: 2, kind: input, shape index: {}]
  %s3 = inlined_call_operand.vmem [shape: f32[32,8], index: 3, kind: input, shape index: {}]
  %s4 = inlined_call_operand.vmem [shape: f32[1,8], index: 4, kind: input, shape index: {}]
  %s5 = inlined_call_operand.vmem [shape: f32[128,8], index: 5, kind: output, shape index: {}]
  %s6 = sld [smem:[#allocation0]]
  $region53: #{net_forward.1} parent=0
    _
  %s8 = ssub.s32 1, %s6
  %s9 = scalar_select 0, %s8, %s6
  loop: start=0, step=1, limit=4
  $region2: #{net_forward.1} parent=0 // loop_pre_header
    _
  $region3: #{net_forward.1} parent=0 // loop_header
    %s11 = sphi 0, %s15
    %p12 = scmp.ge.s32.totalorder %s11, 4
    %s21 = sphi 0, %s23
    %s24 = sphi 0, %s21
    %s25 = sphi 0, %s24
    %s41 = sphi 0, %s25
    %s45 = sphi 0, %s45
    %s47 = sphi 0, %s45
    %s48 = sphi 0, %s47
    %s62 = sphi 0, %s48
    %s66 = sphi 0, %s66
    %s68 = sphi 0, %s66
    %s69 = sphi 0, %s68
    %s83 = sphi 0, %s69
    %s87 = sphi 0, %s87
    %s89 = sphi 0, %s87
    %s90 = sphi 0, %s89
    %s104 = sphi 0, %s90
    %s108 = sphi 0, %s108
    %s110 = sphi 0, %s108
    %s111 = sphi 0, %s110
    %s125 = sphi 0, %s111
    %s131 = sphi 0, %s133
    %s134 = sphi 0, %s131
    %s135 = sphi 0, %s134
    %s151 = sphi 0, %s135
  $region4: #{net_forward.1} parent=0 // loop_header_branch
    %14 = sbr.rel (%p12) target = $region8
  $region5: #{net_forward.1} parent=0 // loop_body
    %s16 = ssub.s32 %s11, 1
    %s17 = ssub.s32 %s11, 2
    %s18 = sadd.s32 %s11, 1
    %s19 = ssub.s32 %s11, %s18
    %p20 = scmp.eq.s32.totalorder %s19, 0
    %s22 = sadd.s32 %s21, 1
    %s23 = scalar_select %p20, %s21, %s22
    %p26 = pneg %p20
    %p27 = scmp.eq.s32.totalorder %s11, 1
    %p28 = por %p26, %p27
    %p29 = scmp.ne.s32.totalorder %s21, %s24
    %p30 = scmp.eq.s32.totalorder %s11, 0
    %p31 = por %p29, %p30
    %p32 = scmp.ne.s32.totalorder %s21, %s24
    %p33 = scmp.eq.s32.totalorder %s16, 1
    %p34 = por %p32, %p33
    %p35 = scmp.ne.s32.totalorder %s24, %s25
    %p36 = scmp.eq.s32.totalorder %s16, 0
    %p37 = por %p35, %p36
    %p38 = scmp.ne.s32.totalorder %s24, %s25
    %p39 = scmp.eq.s32.totalorder %s17, 1
    %p40 = por %p38, %p39
    %p42 = scmp.ne.s32.totalorder %s25, %s41
    %p43 = scmp.eq.s32.totalorder %s17, 0
    %p44 = por %p42, %p43
    %s46 = sadd.s32 %s45, 1
    %p49 = scmp.eq.s32.totalorder %s11, 1
    %p50 = scmp.ne.s32.totalorder %s45, %s47
    %p51 = scmp.eq.s32.totalorder %s11, 0
    %p52 = por %p50, %p51
    %p53 = scmp.ne.s32.totalorder %s45, %s47
    %p54 = scmp.eq.s32.totalorder %s16, 1
    %p55 = por %p53, %p54
    %p56 = scmp.ne.s32.totalorder %s47, %s48
    %p57 = scmp.eq.s32.totalorder %s16, 0
    %p58 = por %p56, %p57
    %p59 = scmp.ne.s32.totalorder %s47, %s48
    %p60 = scmp.eq.s32.totalorder %s17, 1
    %p61 = por %p59, %p60
    %p63 = scmp.ne.s32.totalorder %s48, %s62
    %p64 = scmp.eq.s32.totalorder %s17, 0
    %p65 = por %p63, %p64
    %s67 = sadd.s32 %s66, 1
    %p70 = scmp.eq.s32.totalorder %s11, 1
    %p71 = scmp.ne.s32.totalorder %s66, %s68
    %p72 = scmp.eq.s32.totalorder %s11, 0
    %p73 = por %p71, %p72
    %p74 = scmp.ne.s32.totalorder %s66, %s68
    %p75 = scmp.eq.s32.totalorder %s16, 1
    %p76 = por %p74, %p75
    %p77 = scmp.ne.s32.totalorder %s68, %s69
    %p78 = scmp.eq.s32.totalorder %s16, 0
    %p79 = por %p77, %p78
    %p80 = scmp.ne.s32.totalorder %s68, %s69
    %p81 = scmp.eq.s32.totalorder %s17, 1
    %p82 = por %p80, %p81
    %p84 = scmp.ne.s32.totalorder %s69, %s83
    %p85 = scmp.eq.s32.totalorder %s17, 0
    %p86 = por %p84, %p85
    %s88 = sadd.s32 %s87, 1
    %p91 = scmp.eq.s32.totalorder %s11, 1
    %p92 = scmp.ne.s32.totalorder %s87, %s89
    %p93 = scmp.eq.s32.totalorder %s11, 0
    %p94 = por %p92, %p93
    %p95 = scmp.ne.s32.totalorder %s87, %s89
    %p96 = scmp.eq.s32.totalorder %s16, 1
    %p97 = por %p95, %p96
    %p98 = scmp.ne.s32.totalorder %s89, %s90
    %p99 = scmp.eq.s32.totalorder %s16, 0
    %p100 = por %p98, %p99
    %p101 = scmp.ne.s32.totalorder %s89, %s90
    %p102 = scmp.eq.s32.totalorder %s17, 1
    %p103 = por %p101, %p102
    %p105 = scmp.ne.s32.totalorder %s90, %s104
    %p106 = scmp.eq.s32.totalorder %s17, 0
    %p107 = por %p105, %p106
    %s109 = sadd.s32 %s108, 1
    %p112 = scmp.eq.s32.totalorder %s11, 1
    %p113 = scmp.ne.s32.totalorder %s108, %s110
    %p114 = scmp.eq.s32.totalorder %s11, 0
    %p115 = por %p113, %p114
    %p116 = scmp.ne.s32.totalorder %s108, %s110
    %p117 = scmp.eq.s32.totalorder %s16, 1
    %p118 = por %p116, %p117
    %p119 = scmp.ne.s32.totalorder %s110, %s111
    %p120 = scmp.eq.s32.totalorder %s16, 0
    %p121 = por %p119, %p120
    %p122 = scmp.ne.s32.totalorder %s110, %s111
    %p123 = scmp.eq.s32.totalorder %s17, 1
    %p124 = por %p122, %p123
    %p126 = scmp.ne.s32.totalorder %s111, %s125
    %p127 = scmp.eq.s32.totalorder %s17, 0
    %p128 = por %p126, %p127
    %s129 = ssub.s32 %s11, %s18
    %p130 = scmp.eq.s32.totalorder %s129, 0
    %s132 = sadd.s32 %s131, 1
    %s133 = scalar_select %p130, %s131, %s132
    %p136 = pneg %p130
    %p137 = scmp.eq.s32.totalorder %s11, 1
    %p138 = por %p136, %p137
    %p139 = scmp.ne.s32.totalorder %s131, %s134
    %p140 = scmp.eq.s32.totalorder %s11, 0
    %p141 = por %p139, %p140
    %p142 = scmp.ne.s32.totalorder %s131, %s134
    %p143 = scmp.eq.s32.totalorder %s16, 1
    %p144 = por %p142, %p143
    %p145 = scmp.ne.s32.totalorder %s134, %s135
    %p146 = scmp.eq.s32.totalorder %s16, 0
    %p147 = por %p145, %p146
    %p148 = scmp.ne.s32.totalorder %s134, %s135
    %p149 = scmp.eq.s32.totalorder %s17, 1
    %p150 = por %p148, %p149
    %p152 = scmp.ne.s32.totalorder %s135, %s151
    %p153 = scmp.eq.s32.totalorder %s17, 0
    %p154 = por %p152, %p153
    %p155 = scmp.le.s32.totalorder 1, %s11
    %p156 = scmp.lt.s32.totalorder %s11, 3
    %p157 = pnand %p155, %p156
    %p158 = pneg %p157
    // Predicated region
    $region9: #{net_forward.1} parent=5 // pred_check
      _
    $region10: #{net_forward.1} parent=5 // pred_check_branch
      %160 = sbr.rel (%p157) target = $region12
    $region11: #{net_forward.1} parent=5 // pred_region
      %s161 = ssub.s32 %s11, 1
      // Predicated region
      $region13: #{net_forward.1} parent=11 // pred_check
        %p162 = pneg %p58
      $region14: #{net_forward.1} parent=11 // pred_check_branch
        %164 = sbr.rel (%p162) target = $region16
      $region15: #{net_forward.1} parent=11 // pred_region
        _
      $region16: #{net_forward.1} parent=11 // pred_fallthru
        _
      // Predicated region
      $region17: #{net_forward.1} parent=11 // pred_check
        %p165 = pneg %p79
      $region18: #{net_forward.1} parent=11 // pred_check_branch
        %167 = sbr.rel (%p165) target = $region20
      $region19: #{net_forward.1} parent=11 // pred_region
        _
      $region20: #{net_forward.1} parent=11 // pred_fallthru
        _
      // Predicated region
      $region21: #{net_forward.1} parent=11 // pred_check
        %p168 = pneg %p100
      $region22: #{net_forward.1} parent=11 // pred_check_branch
        %170 = sbr.rel (%p168) target = $region24
      $region23: #{net_forward.1} parent=11 // pred_region
        _
      $region24: #{net_forward.1} parent=11 // pred_fallthru
        _
      // Predicated region
      $region25: #{net_forward.1} parent=11 // pred_check
        %p171 = pneg %p121
      $region26: #{net_forward.1} parent=11 // pred_check_branch
        %173 = sbr.rel (%p171) target = $region28
      $region27: #{net_forward.1} parent=11 // pred_region
        _
      $region28: #{net_forward.1} parent=11 // pred_fallthru
        _
    $region12: #{net_forward.1} parent=5 // pred_fallthru
      _
    %p174 = scmp.lt.s32.totalorder %s11, 2
    // Predicated region
    $region29: #{net_forward.1} parent=5 // pred_check
      %p175 = pneg %p174
    $region30: #{net_forward.1} parent=5 // pred_check_branch
      %177 = sbr.rel (%p175) target = $region32
    $region31: #{net_forward.1} parent=5 // pred_region
      // Predicated region
      $region33: #{net_forward.1} parent=31 // pred_check
        %p178 = pneg %p31
      $region34: #{net_forward.1} parent=31 // pred_check_branch
        %180 = sbr.rel (%p178) target = $region36
      $region35: #{net_forward.1} parent=31 // pred_region
        %s181 = smul.u32 8, %s11
        %p182 = scmp.lt.s32.totalorder %s181, 15
        %s183 = scalar_select %p182, %s181, 15
        %s184 = smul.addr %s183, 8
        %s185 = scalar_lea.vmem %s0, %s184
        %s186 = smul.u32 8, %s11
      $region36: #{net_forward.1} parent=31 // pred_fallthru
        _
    $region32: #{net_forward.1} parent=5 // pred_fallthru
      _
    %p187 = scmp.le.s32.totalorder 1, %s11
    %p188 = scmp.lt.s32.totalorder %s11, 3
    %p189 = pnand %p187, %p188
    %p190 = pneg %p189
    // Predicated region
    $region37: #{net_forward.1} parent=5 // pred_check
      _
    $region38: #{net_forward.1} parent=5 // pred_check_branch
      %192 = sbr.rel (%p189) target = $region40
    $region39: #{net_forward.1} parent=5 // pred_region
      %s193 = ssub.s32 %s11, 1
      %s194 = smul.u32 8, %s16
      %p195 = scmp.lt.s32.totalorder %s194, 15
      %s196 = scalar_select %p195, %s194, 15
      %s197 = smul.addr %s196, 8
      %s198 = scalar_lea.vmem %s0, %s197
      %p199 = pneg %p37
      %p200 = pneg %p34
      %p201 = pneg %p58
      %p202 = pneg %p55
      %p203 = pneg %p79
      %p204 = pneg %p76
      %p205 = pneg %p100
      %p206 = pneg %p97
      %p207 = pneg %p121
      %p208 = pneg %p118
      %p209 = pneg %p147
      %p210 = pneg %p144
      %s211 = smul.u32 8, %s16
      %p212 = scmp.lt.s32.totalorder %s211, 15
      %s213 = scalar_select %p212, %s211, 15
      %s214 = smul.addr %s213, 8
      %s215 = scalar_lea.vmem %s5, %s214
      %s216 = smul.u32 8, %s16
      %p217 = scmp.lt.s32.totalorder %s216, 15
      %s218 = scalar_select %p217, %s216, 15
      %s219 = smul.addr %s218, 8
      %s220 = scalar_lea.vmem %s0, %s219
      %s221 = smul.u32 8, %s16
      %s222 = smul.u32 8, %s16
      %p223 = scmp.lt.s32.totalorder %s222, 15
      %s224 = scalar_select %p223, %s222, 15
      %s225 = smul.addr %s224, 8
      %s226 = scalar_lea.vmem %s5, %s225
      %s227 = smul.u32 8, %s16
      %v228 = vld [vmem:[%s220] sm:$0xff]
      %v229 = vld [vmem:[%s220 + $0x8] sm:$0xff]
      %v230 = vld [vmem:[%s220 + $0x10] sm:$0xff]
      %v231 = vld [vmem:[%s220 + $0x18] sm:$0xff]
      %v232 = vld [vmem:[%s220 + $0x20] sm:$0xff]
      %v233 = vld [vmem:[%s220 + $0x28] sm:$0xff]
      %v234 = vld [vmem:[%s220 + $0x30] sm:$0xff]
      %v235 = vld [vmem:[%s220 + $0x38] sm:$0xff]
      %v236 = vld [vmem:[%s1] sm:$0xff]
      %v237 = vld [vmem:[%s2] sm:$0x1]
      %v239 = vlaneseq
      %v240 = vshrl.u32 %v239, 7
      %v241 = vsub.s32 0, %v240
      %v242 = vrot.slane %v237, %v241
      %vm244 = vcmask 64512
      %v246 = vsel %vm244, %v228, 0
      %v249 = vsel %vm244, %v229, 0
      %v252 = vsel %vm244, %v230, 0
      %v255 = vsel %vm244, %v231, 0
      %v258 = vsel %vm244, %v232, 0
      %v261 = vsel %vm244, %v233, 0
      %v264 = vsel %vm244, %v234, 0
      %v267 = vsel %vm244, %v235, 0
      %269 = vmatprep.subr.mxu0 0.0
      %270 = vmatpush1.msra.mxu0 %v236
      %271 = vmatprep.subr.mxu0 0.0
      %272 = vmatpush1.msra.mxu0 0.0
      %273 = vmatprep.subr.mxu0 0.0
      %274 = vmatpush1.msra.mxu0 0.0
      %275 = vmatprep.subr.mxu0 0.0
      %276 = vmatpush1.msra.mxu0 0.0
      %277 = vmatprep.subr.mxu0 0.0
      %278 = vmatpush1.msra.mxu0 0.0
      %279 = vmatprep.subr.mxu0 0.0
      %280 = vmatpush1.msra.mxu0 0.0
      %281 = vmatprep.subr.mxu0 0.0
      %282 = vmatpush1.msra.mxu0 0.0
      %283 = vmatprep.subr.mxu0 0.0
      %284 = vmatpush1.msra.mxu0 0.0
      %285 = vmatprep.subr.mxu0 0.0
      %286 = vmatpush1.msra.mxu0 0.0
      %287 = vmatprep.subr.mxu0 0.0
      %288 = vmatpush1.msra.mxu0 0.0
      %289 = vmatprep.subr.mxu0 0.0
      %290 = vmatpush1.msra.mxu0 0.0
      %291 = vmatprep.subr.mxu0 0.0
      %292 = vmatpush1.msra.mxu0 0.0
      %293 = vmatprep.subr.mxu0 0.0
      %294 = vmatpush1.msra.mxu0 0.0
      %295 = vmatprep.subr.mxu0 0.0
      %296 = vmatpush1.msra.mxu0 0.0
      %297 = vmatprep.subr.mxu0 0.0
      %298 = vmatpush1.msra.mxu0 0.0
      %299 = vmatprep.subr.mxu0 0.0
      %300 = vmatpush1.msra.mxu0 0.0
      %301 = vmatprep.subr.mxu0 0.0
      %302 = vmatpush1.msra.mxu0 0.0
      %303 = vmatprep.subr.mxu0 0.0
      %304 = vmatpush1.msra.mxu0 0.0
      %305 = vmatprep.subr.mxu0 0.0
      %306 = vmatpush1.msra.mxu0 0.0
      %307 = vmatprep.subr.mxu0 0.0
      %308 = vmatpush1.msra.mxu0 0.0
      %309 = vmatprep.subr.mxu0 0.0
      %310 = vmatpush1.msra.mxu0 0.0
      %311 = vmatprep.subr.mxu0 0.0
      %312 = vmatpush1.msra.mxu0 0.0
      %313 = vmatprep.subr.mxu0 0.0
      %314 = vmatpush1.msra.mxu0 0.0
      %315 = vmatprep.subr.mxu0 0.0
      %316 = vmatpush1.msra.mxu0 0.0
      %317 = vmatprep.subr.mxu0 0.0
      %318 = vmatpush1.msra.mxu0 0.0
      %319 = vmatprep.subr.mxu0 0.0
      %320 = vmatpush1.msra.mxu0 0.0
      %321 = vmatprep.subr.mxu0 0.0
      %322 = vmatpush1.msra.mxu0 0.0
      %323 = vmatprep.subr.mxu0 0.0
      %324 = vmatpush1.msra.mxu0 0.0
      %325 = vmatprep.subr.mxu0 0.0
      %326 = vmatpush1.msra.mxu0 0.0
      %327 = vmatprep.subr.mxu0 0.0
      %328 = vmatpush1.msra.mxu0 0.0
      %329 = vmatprep.subr.mxu0 0.0
      %330 = vmatpush1.msra.mxu0 0.0
      %331 = vmatprep.subr.mxu0 0.0
      %332 = vmatpush1.msra.mxu0 0.0
      %333 = vmatprep.mubr.f32.mxu0 0.0
      %334 = vmatmul.mubr.f32.gmra.mrb[0].mxu0 %v246
      %v335 = vpop.f32.mrb[0].mxu0
      %v336 = vadd.f32 %v242, %v335
      %v337 = vpop.f32.mrb[0].mxu0
      %338 = vmatprep.mubr.f32.mxu0 0.0
      %339 = vmatmul.mubr.f32.gmra.mrb[0].mxu0 %v249
      %v340 = vpop.f32.mrb[0].mxu0
      %v341 = vadd.f32 %v242, %v340
      %v342 = vpop.f32.mrb[0].mxu0
      %343 = vmatprep.mubr.f32.mxu0 0.0
      %344 = vmatmul.mubr.f32.gmra.mrb[0].mxu0 %v252
      %v345 = vpop.f32.mrb[0].mxu0
      %v346 = vadd.f32 %v242, %v345
      %v347 = vpop.f32.mrb[0].mxu0
      %348 = vmatprep.mubr.f32.mxu0 0.0
      %349 = vmatmul.mubr.f32.gmra.mrb[0].mxu0 %v255
      %v350 = vpop.f32.mrb[0].mxu0
      %v351 = vadd.f32 %v242, %v350
      %v352 = vpop.f32.mrb[0].mxu0
      %353 = vmatprep.mubr.f32.mxu0 0.0
      %354 = vmatmul.mubr.f32.gmra.mrb[0].mxu0 %v258
      %v355 = vpop.f32.mrb[0].mxu0
      %v356 = vadd.f32 %v242, %v355
      %v357 = vpop.f32.mrb[0].mxu0
      %358 = vmatprep.mubr.f32.mxu0 0.0
      %359 = vmatmul.mubr.f32.gmra.mrb[0].mxu0 %v261
      %v360 = vpop.f32.mrb[0].mxu0
      %v361 = vadd.f32 %v242, %v360
      %v362 = vpop.f32.mrb[0].mxu0
      %363 = vmatprep.mubr.f32.mxu0 0.0
      %364 = vmatmul.mubr.f32.gmra.mrb[0].mxu0 %v264
      %v365 = vpop.f32.mrb[0].mxu0
      %v366 = vadd.f32 %v242, %v365
      %v367 = vpop.f32.mrb[0].mxu0
      %368 = vmatprep.mubr.f32.mxu0 0.0
      %369 = vmatmul.mubr.f32.gmra.mrb[0].mxu0 %v267
      %v370 = vpop.f32.mrb[0].mxu0
      %v371 = vadd.f32 %v242, %v370
      %v372 = vpop.f32.mrb[0].mxu0
      %373 = vdwg.mxu0
      %v374 = vmax.f32 %v336, 0.0
      %v375 = vmax.f32 %v341, 0.0
      %v376 = vmax.f32 %v346, 0.0
      %v377 = vmax.f32 %v351, 0.0
      %v378 = vmax.f32 %v356, 0.0
      %v379 = vmax.f32 %v361, 0.0
      %v380 = vmax.f32 %v366, 0.0
      %v381 = vmax.f32 %v371, 0.0
      %v382 = vld [vmem:[%s3] sm:$0xff]
      %v383 = vld [vmem:[%s3 + $0x8] sm:$0xff]
      %v384 = vld [vmem:[%s3 + $0x10] sm:$0xff]
      %v385 = vld [vmem:[%s3 + $0x18] sm:$0xff]
      %v386 = vld [vmem:[%s4] sm:$0x1]
      %v388 = vlaneseq
      %v389 = vshrl.u32 %v388, 7
      %v390 = vsub.s32 0, %v389
      %v391 = vrot.slane %v386, %v390
      %vm393 = vcmask 261120
      %v395 = vsel %vm393, %v374, 0
      %v398 = vsel %vm393, %v375, 0
      %v401 = vsel %vm393, %v376, 0
      %v404 = vsel %vm393, %v377, 0
      %v407 = vsel %vm393, %v378, 0
      %v410 = vsel %vm393, %v379, 0
      %v413 = vsel %vm393, %v380, 0
      %v416 = vsel %vm393, %v381, 0
      %418 = vmatprep.subr.mxu0 0.0
      %419 = vmatpush1.msra.mxu0 %v382
      %420 = vmatprep.subr.mxu0 0.0
      %421 = vmatpush1.msra.mxu0 %v383
      %422 = vmatprep.subr.mxu0 0.0
      %423 = vmatpush1.msra.mxu0 %v384
      %424 = vmatprep.subr.mxu0 0.0
      %425 = vmatpush1.msra.mxu0 %v385
      %426 = vmatprep.subr.mxu0 0.0
      %427 = vmatpush1.msra.mxu0 0.0
      %428 = vmatprep.subr.mxu0 0.0
      %429 = vmatpush1.msra.mxu0 0.0
      %430 = vmatprep.subr.mxu0 0.0
      %431 = vmatpush1.msra.mxu0 0.0
      %432 = vmatprep.subr.mxu0 0.0
      %433 = vmatpush1.msra.mxu0 0.0
      %434 = vmatprep.subr.mxu0 0.0
      %435 = vmatpush1.msra.mxu0 0.0
      %436 = vmatprep.subr.mxu0 0.0
      %437 = vmatpush1.msra.mxu0 0.0
      %438 = vmatprep.subr.mxu0 0.0
      %439 = vmatpush1.msra.mxu0 0.0
      %440 = vmatprep.subr.mxu0 0.0
      %441 = vmatpush1.msra.mxu0 0.0
      %442 = vmatprep.subr.mxu0 0.0
      %443 = vmatpush1.msra.mxu0 0.0
      %444 = vmatprep.subr.mxu0 0.0
      %445 = vmatpush1.msra.mxu0 0.0
      %446 = vmatprep.subr.mxu0 0.0
      %447 = vmatpush1.msra.mxu0 0.0
      %448 = vmatprep.subr.mxu0 0.0
      %449 = vmatpush1.msra.mxu0 0.0
      %450 = vmatprep.subr.mxu0 0.0
      %451 = vmatpush1.msra.mxu0 0.0
      %452 = vmatprep.subr.mxu0 0.0
      %453 = vmatpush1.msra.mxu0 0.0
      %454 = vmatprep.subr.mxu0 0.0
      %455 = vmatpush1.msra.mxu0 0.0
      %456 = vmatprep.subr.mxu0 0.0
      %457 = vmatpush1.msra.mxu0 0.0
      %458 = vmatprep.subr.mxu0 0.0
      %459 = vmatpush1.msra.mxu0 0.0
      %460 = vmatprep.subr.mxu0 0.0
      %461 = vmatpush1.msra.mxu0 0.0
      %462 = vmatprep.subr.mxu0 0.0
      %463 = vmatpush1.msra.mxu0 0.0
      %464 = vmatprep.subr.mxu0 0.0
      %465 = vmatpush1.msra.mxu0 0.0
      %466 = vmatprep.subr.mxu0 0.0
      %467 = vmatpush1.msra.mxu0 0.0
      %468 = vmatprep.subr.mxu0 0.0
      %469 = vmatpush1.msra.mxu0 0.0
      %470 = vmatprep.subr.mxu0 0.0
      %471 = vmatpush1.msra.mxu0 0.0
      %472 = vmatprep.subr.mxu0 0.0
      %473 = vmatpush1.msra.mxu0 0.0
      %474 = vmatprep.subr.mxu0 0.0
      %475 = vmatpush1.msra.mxu0 0.0
      %476 = vmatprep.subr.mxu0 0.0
      %477 = vmatpush1.msra.mxu0 0.0
      %478 = vmatprep.subr.mxu0 0.0
      %479 = vmatpush1.msra.mxu0 0.0
      %480 = vmatprep.subr.mxu0 0.0
      %481 = vmatpush1.msra.mxu0 0.0
      %482 = vmatprep.mubr.f32.mxu0 0.0
      %483 = vmatmul.mubr.f32.gmra.mrb[0].mxu0 %v395
      %v484 = vpop.f32.mrb[0].mxu0
      %v485 = vadd.f32 %v391, %v484
      %v486 = vpop.f32.mrb[0].mxu0
      %487 = vmatprep.mubr.f32.mxu0 0.0
      %488 = vmatmul.mubr.f32.gmra.mrb[0].mxu0 %v398
      %v489 = vpop.f32.mrb[0].mxu0
      %v490 = vadd.f32 %v391, %v489
      %v491 = vpop.f32.mrb[0].mxu0
      %492 = vmatprep.mubr.f32.mxu0 0.0
      %493 = vmatmul.mubr.f32.gmra.mrb[0].mxu0 %v401
      %v494 = vpop.f32.mrb[0].mxu0
      %v495 = vadd.f32 %v391, %v494
      %v496 = vpop.f32.mrb[0].mxu0
      %497 = vmatprep.mubr.f32.mxu0 0.0
      %498 = vmatmul.mubr.f32.gmra.mrb[0].mxu0 %v404
      %v499 = vpop.f32.mrb[0].mxu0
      %v500 = vadd.f32 %v391, %v499
      %v501 = vpop.f32.mrb[0].mxu0
      %502 = vmatprep.mubr.f32.mxu0 0.0
      %503 = vmatmul.mubr.f32.gmra.mrb[0].mxu0 %v407
      %v504 = vpop.f32.mrb[0].mxu0
      %v505 = vadd.f32 %v391, %v504
      %v506 = vpop.f32.mrb[0].mxu0
      %507 = vmatprep.mubr.f32.mxu0 0.0
      %508 = vmatmul.mubr.f32.gmra.mrb[0].mxu0 %v410
      %v509 = vpop.f32.mrb[0].mxu0
      %v510 = vadd.f32 %v391, %v509
      %v511 = vpop.f32.mrb[0].mxu0
      %512 = vmatprep.mubr.f32.mxu0 0.0
      %513 = vmatmul.mubr.f32.gmra.mrb[0].mxu0 %v413
      %v514 = vpop.f32.mrb[0].mxu0
      %v515 = vadd.f32 %v391, %v514
      %v516 = vpop.f32.mrb[0].mxu0
      %517 = vmatprep.mubr.f32.mxu0 0.0
      %518 = vmatmul.mubr.f32.gmra.mrb[0].mxu0 %v416
      %v519 = vpop.f32.mrb[0].mxu0
      %v520 = vadd.f32 %v391, %v519
      %v521 = vpop.f32.mrb[0].mxu0
      %522 = vdwg.mxu0
      %523 = vst.msk [vmem:[%s226] sm:$0xff] %vm244, %v485
      %524 = vst.msk [vmem:[%s226 + $0x8] sm:$0xff] %vm244, %v490
      %525 = vst.msk [vmem:[%s226 + $0x10] sm:$0xff] %vm244, %v495
      %526 = vst.msk [vmem:[%s226 + $0x18] sm:$0xff] %vm244, %v500
      %527 = vst.msk [vmem:[%s226 + $0x20] sm:$0xff] %vm244, %v505
      %528 = vst.msk [vmem:[%s226 + $0x28] sm:$0xff] %vm244, %v510
      %529 = vst.msk [vmem:[%s226 + $0x30] sm:$0xff] %vm244, %v515
      %530 = vst.msk [vmem:[%s226 + $0x38] sm:$0xff] %vm244, %v520
      %s531 = smul.u32 8, %s16
      %p532 = scmp.lt.s32.totalorder %s531, 15
      %s533 = scalar_select %p532, %s531, 15
      %s534 = smul.addr %s533, 8
      %s535 = scalar_lea.vmem %s5, %s534
      // Predicated region
      $region41: #{net_forward.1} parent=39 // pred_check
        %p536 = pneg %p144
      $region42: #{net_forward.1} parent=39 // pred_check_branch
        %538 = sbr.rel (%p536) target = $region44
      $region43: #{net_forward.1} parent=39 // pred_region
        %s539 = smul.u32 8, %s16
      $region44: #{net_forward.1} parent=39 // pred_fallthru
        _
    $region40: #{net_forward.1} parent=5 // pred_fallthru
      _
    %p540 = scmp.le.s32.totalorder 2, %s11
    // Predicated region
    $region45: #{net_forward.1} parent=5 // pred_check
      %p541 = pneg %p540
    $region46: #{net_forward.1} parent=5 // pred_check_branch
      %543 = sbr.rel (%p541) target = $region48
    $region47: #{net_forward.1} parent=5 // pred_region
      %s544 = ssub.s32 %s11, 2
      // Predicated region
      $region49: #{net_forward.1} parent=47 // pred_check
        %p545 = pneg %p150
      $region50: #{net_forward.1} parent=47 // pred_check_branch
        %547 = sbr.rel (%p545) target = $region52
      $region51: #{net_forward.1} parent=47 // pred_region
        %s548 = smul.u32 8, %s17
        %p549 = scmp.lt.s32.totalorder %s548, 15
        %s550 = scalar_select %p549, %s548, 15
        %s551 = smul.addr %s550, 8
        %s552 = scalar_lea.vmem %s5, %s551
      $region52: #{net_forward.1} parent=47 // pred_fallthru
        _
    $region48: #{net_forward.1} parent=5 // pred_fallthru
      _
  $region6: #{net_forward.1} parent=0 // loop_footer
    %s15 = sadd.s32 1, %s11
  $region7: #{net_forward.1} parent=0 // loop_footer_branch
    %10 = sbr.rel target = $region3
  $region8: #{net_forward.1} parent=0 // loop_exit
    _

</llo_original>
